<compile_context>
chip_gen: v6e
topology: v6e:2x2x1
jax: 0.10.0
libtpu: 0.0.40
codegen_flags: <defaults>
</compile_context>

<pallas_src>
import jax
import jax.numpy as jnp
from jax.experimental import pallas as pl
from jax.experimental.pallas import tpu as pltpu


def _round_up(n, m):
    return ((n + m - 1) // m) * m


def _denoiser_kernel(t_ref,                       # (1,) SMEM: t / 100
                     x_ref,                       # (TILE_B, D)   f32
                     w1x_ref, w1t_ref, b1_ref,    # (D,H) bf16, (1,H) f32, (1,H) f32
                     w2_ref, b2_ref,              # (H,H) bf16, (1,H) f32
                     w3_ref, b3_ref,
                     w4_ref, b4_ref,
                     w5_ref, b5_ref,              # (H,O) bf16, (1,O) f32
                     out_ref):                    # (TILE_B, O)  f32
    ts = t_ref[0]                                 # scalar t/100 from SMEM (f32)

    # Layer 1 with the folded time-embedding / concat.  bf16 MXU operands,
    # f32 accumulation; all VPU work (bias, t-term, ReLU) stays f32.
    xb = x_ref[...].astype(jnp.bfloat16)
    h = jnp.dot(xb, w1x_ref[...], preferred_element_type=jnp.float32)
    h = h + ts * w1t_ref[...] + b1_ref[...]
    h = jnp.maximum(h, 0.0)

    # encoder.2 -> ReLU
    h = jnp.dot(h.astype(jnp.bfloat16), w2_ref[...],
                preferred_element_type=jnp.float32) + b2_ref[...]
    h = jnp.maximum(h, 0.0)

    # mid.0 -> ReLU
    h = jnp.dot(h.astype(jnp.bfloat16), w3_ref[...],
                preferred_element_type=jnp.float32) + b3_ref[...]
    h = jnp.maximum(h, 0.0)

    # decoder.0 -> ReLU
    h = jnp.dot(h.astype(jnp.bfloat16), w4_ref[...],
                preferred_element_type=jnp.float32) + b4_ref[...]
    h = jnp.maximum(h, 0.0)

    # decoder.2 (no activation)
    h = jnp.dot(h.astype(jnp.bfloat16), w5_ref[...],
                preferred_element_type=jnp.float32) + b5_ref[...]

    out_ref[...] = h.astype(out_ref.dtype)


def init_params(key, input_dim, hidden_dim):
    """Torch-equivalent params. Weights stored as (in_features, out_features), f32."""
    dims = [
        (input_dim, hidden_dim),   # encoder.0
        (hidden_dim, hidden_dim),  # encoder.2
        (hidden_dim, hidden_dim),  # mid.0
        (hidden_dim, hidden_dim),  # decoder.0
        (hidden_dim, input_dim),   # decoder.2
    ]
    params = {}
    for i, (din, dout) in enumerate(dims, start=1):
        key, kw, kb = jax.random.split(key, 3)
        params[f"w{i}"] = (jax.random.normal(kw, (din, dout), jnp.float32)
                           * (1.0 / jnp.sqrt(jnp.float32(din))))
        params[f"b{i}"] = jax.random.normal(kb, (1, dout), jnp.float32) * 0.01
    return params


def prepare_kernel_params(params, data_dim):
    """Split W1 for the folded t-embed; bf16-cast the big weight matrices.

    No feature padding: all arrays keep natural sizes (full-array-dim
    BlockSpecs).  w1t (the t-embed fold) and biases stay f32 (tiny, and the
    elementwise path must be f32 for v5e).
    """
    d = data_dim
    w1 = params["w1"]                                   # (2*d, hidden) f32
    input_dim, _hidden = w1.shape
    assert input_dim == 2 * d, "Linear-1 in_features must equal 2 * data_dim"

    w1x = w1[:d, :].astype(jnp.bfloat16)                # multiplies x
    w1t = jnp.sum(w1[d:, :], axis=0, keepdims=True)     # multiplies t/100 (f32, exact)

    return {
        "w1x": w1x,
        "w1t": w1t,
        "b1":  params["b1"],
        "w2":  params["w2"].astype(jnp.bfloat16), "b2": params["b2"],
        "w3":  params["w3"].astype(jnp.bfloat16), "b3": params["b3"],
        "w4":  params["w4"].astype(jnp.bfloat16), "b4": params["b4"],
        "w5":  params["w5"].astype(jnp.bfloat16), "b5": params["b5"],
        "data_dim": d,
    }


def denoiser_forward(x, t, kparams, *, max_tile_b=1024):
    """x: (B, D) float, t: scalar timestep (device scalar ok), kparams from prepare_kernel_params."""
    B, D = x.shape
    assert D == kparams["data_dim"]
    H = kparams["w1x"].shape[1]
    out_dim = kparams["w5"].shape[1]

    # Batch tiling: multiple of 8 sublanes, capped at max_tile_b, and split
    # into >=2 grid steps when the batch allows it so the "parallel" axis can
    # shard across both v7x TensorCores.
    half = (B + 1) // 2
    tile_b = min(max_tile_b, _round_up(max(half, 1), 8))
    b_pad = _round_up(B, tile_b)
    grid = (b_pad // tile_b,)

    x_p = x.astype(jnp.float32)
    if b_pad != B:
        x_p = jnp.pad(x_p, ((0, b_pad - B), (0, 0)))    # rows only; no lane pad

    # Runtime SMEM scalar: one compile serves every diffusion timestep.
    t_scaled = (jnp.asarray(t, dtype=jnp.float32) / 100.0).reshape(1)

    ws = (kparams["w1x"], kparams["w1t"], kparams["b1"],
          kparams["w2"], kparams["b2"],
          kparams["w3"], kparams["b3"],
          kparams["w4"], kparams["b4"],
          kparams["w5"], kparams["b5"])

    def resident(a):
        # Full-array block, same block index every step -> DMA'd once, VMEM resident.
        return pl.BlockSpec(a.shape, lambda i: (0, 0))

    in_specs = (
        [pl.BlockSpec(memory_space=pltpu.MemorySpace.SMEM),          # t/100 scalar
         pl.BlockSpec((tile_b, D), lambda i: (i, 0))]                # x tile
        + [resident(a) for a in ws]                                  # weights/biases
    )
    out_specs = pl.BlockSpec((tile_b, out_dim), lambda i: (i, 0))

    flops = 2 * b_pad * (D * H + 3 * H * H + H * out_dim)
    bytes_accessed = (4 * b_pad * (D + out_dim)
                      + sum(int(a.size) * a.dtype.itemsize for a in ws) + 4)

    out = pl.pallas_call(
        _denoiser_kernel,
        out_shape=jax.ShapeDtypeStruct((b_pad, out_dim), jnp.float32),
        grid=grid,
        in_specs=in_specs,
        out_specs=out_specs,
        compiler_params=pltpu.CompilerParams(
            dimension_semantics=("parallel",)),
        cost_estimate=pl.CostEstimate(flops=flops, transcendentals=0,
                                      bytes_accessed=bytes_accessed),
    )(t_scaled, x_p, *ws)

    if b_pad != B:
        out = out[:B]
    return out


def denoiser_reference(x, t, params):
    """Pure-JAX f32 reference matching the torch forward exactly."""
    t_embed = jnp.ones_like(x) * (jnp.asarray(t, jnp.float32) / 100.0)
    h = jnp.concatenate([x, t_embed], axis=1)
    h = jnp.maximum(h @ params["w1"] + params["b1"], 0.0)
    h = jnp.maximum(h @ params["w2"] + params["b2"], 0.0)
    h = jnp.maximum(h @ params["w3"] + params["b3"], 0.0)
    h = jnp.maximum(h @ params["w4"] + params["b4"], 0.0)
    return h @ params["w5"] + params["b5"]


if __name__ == "__main__":
    # x is (B, D); concat with t_embed makes (B, 2*D) == Linear-1 input_dim.
    B = 8
    D = 16
    INPUT_DIM = 2 * D      # 32
    HIDDEN_DIM = 32
    T = 37                 # diffusion timestep

    key = jax.random.PRNGKey(0)
    key, kx = jax.random.split(key)
    x = jax.random.normal(kx, (B, D), jnp.float32)
    t_dev = jnp.float32(T)         # device scalar: no recompile per timestep

    params = init_params(key, INPUT_DIM, HIDDEN_DIM)
    kparams = prepare_kernel_params(params, data_dim=D)

    out = denoiser_forward(x, t_dev, kparams)
    out = jax.block_until_ready(out)

    ref = denoiser_reference(x, t_dev, params)
    assert out.shape == (B, INPUT_DIM), out.shape
    # bf16 matmul operands with f32 accumulation -> relaxed tolerance.
    assert jnp.allclose(out, ref, atol=3e-2, rtol=3e-2), "mismatch vs reference"

    print("KERNEL_OK")
</pallas_src>

<mosaic_0001>
module attributes {stable_mosaic.version = 11 : i64} {
  func.func @_denoiser_kernel(%arg0: i32, %arg1: memref<1xf32, #tpu.memory_space<smem>>, %arg2: memref<8x16xf32, #tpu.memory_space<vmem>>, %arg3: memref<16x32xbf16, #tpu.memory_space<vmem>>, %arg4: memref<1x32xf32, #tpu.memory_space<vmem>>, %arg5: memref<1x32xf32, #tpu.memory_space<vmem>>, %arg6: memref<32x32xbf16, #tpu.memory_space<vmem>>, %arg7: memref<1x32xf32, #tpu.memory_space<vmem>>, %arg8: memref<32x32xbf16, #tpu.memory_space<vmem>>, %arg9: memref<1x32xf32, #tpu.memory_space<vmem>>, %arg10: memref<32x32xbf16, #tpu.memory_space<vmem>>, %arg11: memref<1x32xf32, #tpu.memory_space<vmem>>, %arg12: memref<32x32xbf16, #tpu.memory_space<vmem>>, %arg13: memref<1x32xf32, #tpu.memory_space<vmem>>, %arg14: memref<8x32xf32, #tpu.memory_space<vmem>>) attributes {dimension_semantics = [#tpu.dimension_semantics<parallel>], iteration_bounds = array<i64: 1>, scalar_prefetch = 0 : i64, scratch_operands = 0 : i64, tpu.core_type = #tpu.core_type<tc>, window_params = [{transform_indices = @transform_0, window_bounds = array<i64: 1>}, {transform_indices = @transform_1, window_bounds = array<i64: 8, 16>}, {pipeline_mode = #tpu.pipeline_mode<synchronous>, transform_indices = @transform_2, window_bounds = array<i64: 16, 32>}, {pipeline_mode = #tpu.pipeline_mode<synchronous>, transform_indices = @transform_3, window_bounds = array<i64: 1, 32>}, {pipeline_mode = #tpu.pipeline_mode<synchronous>, transform_indices = @transform_4, window_bounds = array<i64: 1, 32>}, {pipeline_mode = #tpu.pipeline_mode<synchronous>, transform_indices = @transform_5, window_bounds = array<i64: 32, 32>}, {pipeline_mode = #tpu.pipeline_mode<synchronous>, transform_indices = @transform_6, window_bounds = array<i64: 1, 32>}, {pipeline_mode = #tpu.pipeline_mode<synchronous>, transform_indices = @transform_7, window_bounds = array<i64: 32, 32>}, {pipeline_mode = #tpu.pipeline_mode<synchronous>, transform_indices = @transform_8, window_bounds = array<i64: 1, 32>}, {pipeline_mode = #tpu.pipeline_mode<synchronous>, transform_indices = @transform_9, window_bounds = array<i64: 32, 32>}, {pipeline_mode = #tpu.pipeline_mode<synchronous>, transform_indices = @transform_10, window_bounds = array<i64: 1, 32>}, {pipeline_mode = #tpu.pipeline_mode<synchronous>, transform_indices = @transform_11, window_bounds = array<i64: 32, 32>}, {pipeline_mode = #tpu.pipeline_mode<synchronous>, transform_indices = @transform_12, window_bounds = array<i64: 1, 32>}, {transform_indices = @transform_13, window_bounds = array<i64: 8, 32>}]} {
    %c0 = arith.constant 0 : index
    %0 = memref.load %arg1[%c0] : memref<1xf32, #tpu.memory_space<smem>>
    %c0_0 = arith.constant 0 : index
    %c0_1 = arith.constant 0 : index
    %1 = vector.load %arg2[%c0_0, %c0_1] : memref<8x16xf32, #tpu.memory_space<vmem>>, vector<8x16xf32>
    %2 = arith.truncf %1 : vector<8x16xf32> to vector<8x16xbf16>
    %c0_2 = arith.constant 0 : index
    %c0_3 = arith.constant 0 : index
    %3 = vector.load %arg3[%c0_2, %c0_3] : memref<16x32xbf16, #tpu.memory_space<vmem>>, vector<16x32xbf16>
    %cst = arith.constant dense<0.000000e+00> : vector<8x32xf32>
    %4 = tpu.matmul %2, %3, %cst {dimension_numbers = #tpu.dot_dimension_numbers<[1], [0], [0], [1], [0, 0, 1, 1], [], []>} : vector<8x16xbf16>, vector<16x32xbf16>, vector<8x32xf32> -> vector<8x32xf32>
    %c0_4 = arith.constant 0 : index
    %c0_5 = arith.constant 0 : index
    %5 = vector.load %arg4[%c0_4, %c0_5] : memref<1x32xf32, #tpu.memory_space<vmem>>, vector<1x32xf32>
    %6 = vector.broadcast %0 : f32 to vector<1x32xf32>
    %7 = arith.mulf %6, %5 : vector<1x32xf32>
    %8 = vector.broadcast %7 : vector<1x32xf32> to vector<8x32xf32>
    %9 = arith.addf %4, %8 : vector<8x32xf32>
    %c0_6 = arith.constant 0 : index
    %c0_7 = arith.constant 0 : index
    %10 = vector.load %arg5[%c0_6, %c0_7] : memref<1x32xf32, #tpu.memory_space<vmem>>, vector<1x32xf32>
    %11 = vector.broadcast %10 : vector<1x32xf32> to vector<8x32xf32>
    %12 = arith.addf %9, %11 : vector<8x32xf32>
    %cst_8 = arith.constant 0.000000e+00 : f32
    %13 = vector.broadcast %cst_8 : f32 to vector<8x32xf32>
    %14 = arith.maximumf %12, %13 : vector<8x32xf32>
    %15 = arith.truncf %14 : vector<8x32xf32> to vector<8x32xbf16>
    %c0_9 = arith.constant 0 : index
    %c0_10 = arith.constant 0 : index
    %16 = vector.load %arg6[%c0_9, %c0_10] : memref<32x32xbf16, #tpu.memory_space<vmem>>, vector<32x32xbf16>
    %cst_11 = arith.constant dense<0.000000e+00> : vector<8x32xf32>
    %17 = tpu.matmul %15, %16, %cst_11 {dimension_numbers = #tpu.dot_dimension_numbers<[1], [0], [0], [1], [0, 0, 1, 1], [], []>} : vector<8x32xbf16>, vector<32x32xbf16>, vector<8x32xf32> -> vector<8x32xf32>
    %c0_12 = arith.constant 0 : index
    %c0_13 = arith.constant 0 : index
    %18 = vector.load %arg7[%c0_12, %c0_13] : memref<1x32xf32, #tpu.memory_space<vmem>>, vector<1x32xf32>
    %19 = vector.broadcast %18 : vector<1x32xf32> to vector<8x32xf32>
    %20 = arith.addf %17, %19 : vector<8x32xf32>
    %cst_14 = arith.constant 0.000000e+00 : f32
    %21 = vector.broadcast %cst_14 : f32 to vector<8x32xf32>
    %22 = arith.maximumf %20, %21 : vector<8x32xf32>
    %23 = arith.truncf %22 : vector<8x32xf32> to vector<8x32xbf16>
    %c0_15 = arith.constant 0 : index
    %c0_16 = arith.constant 0 : index
    %24 = vector.load %arg8[%c0_15, %c0_16] : memref<32x32xbf16, #tpu.memory_space<vmem>>, vector<32x32xbf16>
    %cst_17 = arith.constant dense<0.000000e+00> : vector<8x32xf32>
    %25 = tpu.matmul %23, %24, %cst_17 {dimension_numbers = #tpu.dot_dimension_numbers<[1], [0], [0], [1], [0, 0, 1, 1], [], []>} : vector<8x32xbf16>, vector<32x32xbf16>, vector<8x32xf32> -> vector<8x32xf32>
    %c0_18 = arith.constant 0 : index
    %c0_19 = arith.constant 0 : index
    %26 = vector.load %arg9[%c0_18, %c0_19] : memref<1x32xf32, #tpu.memory_space<vmem>>, vector<1x32xf32>
    %27 = vector.broadcast %26 : vector<1x32xf32> to vector<8x32xf32>
    %28 = arith.addf %25, %27 : vector<8x32xf32>
    %cst_20 = arith.constant 0.000000e+00 : f32
    %29 = vector.broadcast %cst_20 : f32 to vector<8x32xf32>
    %30 = arith.maximumf %28, %29 : vector<8x32xf32>
    %31 = arith.truncf %30 : vector<8x32xf32> to vector<8x32xbf16>
    %c0_21 = arith.constant 0 : index
    %c0_22 = arith.constant 0 : index
    %32 = vector.load %arg10[%c0_21, %c0_22] : memref<32x32xbf16, #tpu.memory_space<vmem>>, vector<32x32xbf16>
    %cst_23 = arith.constant dense<0.000000e+00> : vector<8x32xf32>
    %33 = tpu.matmul %31, %32, %cst_23 {dimension_numbers = #tpu.dot_dimension_numbers<[1], [0], [0], [1], [0, 0, 1, 1], [], []>} : vector<8x32xbf16>, vector<32x32xbf16>, vector<8x32xf32> -> vector<8x32xf32>
    %c0_24 = arith.constant 0 : index
    %c0_25 = arith.constant 0 : index
    %34 = vector.load %arg11[%c0_24, %c0_25] : memref<1x32xf32, #tpu.memory_space<vmem>>, vector<1x32xf32>
    %35 = vector.broadcast %34 : vector<1x32xf32> to vector<8x32xf32>
    %36 = arith.addf %33, %35 : vector<8x32xf32>
    %cst_26 = arith.constant 0.000000e+00 : f32
    %37 = vector.broadcast %cst_26 : f32 to vector<8x32xf32>
    %38 = arith.maximumf %36, %37 : vector<8x32xf32>
    %39 = arith.truncf %38 : vector<8x32xf32> to vector<8x32xbf16>
    %c0_27 = arith.constant 0 : index
    %c0_28 = arith.constant 0 : index
    %40 = vector.load %arg12[%c0_27, %c0_28] : memref<32x32xbf16, #tpu.memory_space<vmem>>, vector<32x32xbf16>
    %cst_29 = arith.constant dense<0.000000e+00> : vector<8x32xf32>
    %41 = tpu.matmul %39, %40, %cst_29 {dimension_numbers = #tpu.dot_dimension_numbers<[1], [0], [0], [1], [0, 0, 1, 1], [], []>} : vector<8x32xbf16>, vector<32x32xbf16>, vector<8x32xf32> -> vector<8x32xf32>
    %c0_30 = arith.constant 0 : index
    %c0_31 = arith.constant 0 : index
    %42 = vector.load %arg13[%c0_30, %c0_31] : memref<1x32xf32, #tpu.memory_space<vmem>>, vector<1x32xf32>
    %43 = vector.broadcast %42 : vector<1x32xf32> to vector<8x32xf32>
    %44 = arith.addf %41, %43 : vector<8x32xf32>
    %c0_32 = arith.constant 0 : index
    %c0_33 = arith.constant 0 : index
    %45 = vector.load %arg14[%c0_32, %c0_33] : memref<8x32xf32, #tpu.memory_space<vmem>>, vector<8x32xf32>
    tpu.vector_store %arg14[%c0_32, %c0_33], %44 {strides = array<i32>} : memref<8x32xf32, #tpu.memory_space<vmem>>, vector<8x32xf32>,
    return
  }
  func.func @transform_0(%arg0: i32) -> i32 {
    %c0_i32 = arith.constant 0 : i32
    %c0_i32_0 = arith.constant 0 : i32
    return %c0_i32 : i32
  }
  func.func @transform_1(%arg0: i32) -> (i32, i32) {
    %c0_i32 = arith.constant 0 : i32
    %c0_i32_0 = arith.constant 0 : i32
    return %arg0, %c0_i32 : i32, i32
  }
  func.func @transform_2(%arg0: i32) -> (i32, i32) {
    %c0_i32 = arith.constant 0 : i32
    %c0_i32_0 = arith.constant 0 : i32
    %c0_i32_1 = arith.constant 0 : i32
    return %c0_i32, %c0_i32_0 : i32, i32
  }
  func.func @transform_3(%arg0: i32) -> (i32, i32) {
    %c0_i32 = arith.constant 0 : i32
    %c0_i32_0 = arith.constant 0 : i32
    %c0_i32_1 = arith.constant 0 : i32
    return %c0_i32, %c0_i32_0 : i32, i32
  }
  func.func @transform_4(%arg0: i32) -> (i32, i32) {
    %c0_i32 = arith.constant 0 : i32
    %c0_i32_0 = arith.constant 0 : i32
    %c0_i32_1 = arith.constant 0 : i32
    return %c0_i32, %c0_i32_0 : i32, i32
  }
  func.func @transform_5(%arg0: i32) -> (i32, i32) {
    %c0_i32 = arith.constant 0 : i32
    %c0_i32_0 = arith.constant 0 : i32
    %c0_i32_1 = arith.constant 0 : i32
    return %c0_i32, %c0_i32_0 : i32, i32
  }
  func.func @transform_6(%arg0: i32) -> (i32, i32) {
    %c0_i32 = arith.constant 0 : i32
    %c0_i32_0 = arith.constant 0 : i32
    %c0_i32_1 = arith.constant 0 : i32
    return %c0_i32, %c0_i32_0 : i32, i32
  }
  func.func @transform_7(%arg0: i32) -> (i32, i32) {
    %c0_i32 = arith.constant 0 : i32
    %c0_i32_0 = arith.constant 0 : i32
    %c0_i32_1 = arith.constant 0 : i32
    return %c0_i32, %c0_i32_0 : i32, i32
  }
  func.func @transform_8(%arg0: i32) -> (i32, i32) {
    %c0_i32 = arith.constant 0 : i32
    %c0_i32_0 = arith.constant 0 : i32
    %c0_i32_1 = arith.constant 0 : i32
    return %c0_i32, %c0_i32_0 : i32, i32
  }
  func.func @transform_9(%arg0: i32) -> (i32, i32) {
    %c0_i32 = arith.constant 0 : i32
    %c0_i32_0 = arith.constant 0 : i32
    %c0_i32_1 = arith.constant 0 : i32
    return %c0_i32, %c0_i32_0 : i32, i32
  }
  func.func @transform_10(%arg0: i32) -> (i32, i32) {
    %c0_i32 = arith.constant 0 : i32
    %c0_i32_0 = arith.constant 0 : i32
    %c0_i32_1 = arith.constant 0 : i32
    return %c0_i32, %c0_i32_0 : i32, i32
  }
  func.func @transform_11(%arg0: i32) -> (i32, i32) {
    %c0_i32 = arith.constant 0 : i32
    %c0_i32_0 = arith.constant 0 : i32
    %c0_i32_1 = arith.constant 0 : i32
    return %c0_i32, %c0_i32_0 : i32, i32
  }
  func.func @transform_12(%arg0: i32) -> (i32, i32) {
    %c0_i32 = arith.constant 0 : i32
    %c0_i32_0 = arith.constant 0 : i32
    %c0_i32_1 = arith.constant 0 : i32
    return %c0_i32, %c0_i32_0 : i32, i32
  }
  func.func @transform_13(%arg0: i32) -> (i32, i32) {
    %c0_i32 = arith.constant 0 : i32
    %c0_i32_0 = arith.constant 0 : i32
    return %arg0, %c0_i32 : i32, i32
  }
}

</mosaic_0001>

<llo_original>
// kernel: tpu_custom_call.1
$region0: #{tpu_custom_call.1}
  #allocation0 [shape = 'u32[]', space=smem, size = 0x4, offset = 0x4, fixed_abs, tag = 'smem constant byte address 0x4 - core index']
  #allocation1 [shape = 'u32[144,128]{1,0:T(1,128)}', space=vmem, size = 0x12000, scoped, tag = 'internal scratch']
  #allocation2 [shape = 'f32[1]{0:T(128)S(6)}', space=smem, size = 0x200, scoped, tag = 'scoped memory for tpu_custom_call.1']
  %s0 = inlined_call_operand.<no memory space> [shape: f32[1], index: 0, kind: input, shape index: {}]
  %s1 = inlined_call_operand.hbm [shape: f32[8,16], index: 1, kind: input, shape index: {}]
  %s2 = inlined_call_operand.hbm [shape: bf16[16,32], index: 2, kind: input, shape index: {}]
  %s3 = inlined_call_operand.hbm [shape: f32[1,32], index: 3, kind: input, shape index: {}]
  %s4 = inlined_call_operand.hbm [shape: f32[1,32], index: 4, kind: input, shape index: {}]
  %s5 = inlined_call_operand.hbm [shape: bf16[32,32], index: 5, kind: input, shape index: {}]
  %s6 = inlined_call_operand.hbm [shape: f32[1,32], index: 6, kind: input, shape index: {}]
  %s7 = inlined_call_operand.hbm [shape: bf16[32,32], index: 7, kind: input, shape index: {}]
  %s8 = inlined_call_operand.hbm [shape: f32[1,32], index: 8, kind: input, shape index: {}]
  %s9 = inlined_call_operand.vmem [shape: bf16[32,32], index: 9, kind: input, shape index: {}]
  %s10 = inlined_call_operand.vmem [shape: f32[1,32], index: 10, kind: input, shape index: {}]
  %s11 = inlined_call_operand.hbm [shape: bf16[32,32], index: 11, kind: input, shape index: {}]
  %s12 = inlined_call_operand.vmem [shape: f32[1,32], index: 12, kind: input, shape index: {}]
  %s13 = inlined_call_operand.hbm [shape: f32[8,32], index: 13, kind: output, shape index: {}]
  %s14 = sld [smem:[#allocation0]]
  $region98: #{tpu_custom_call.1} parent=0
    _
  %s16 = ssub.s32 1, %s14
  %s17 = scalar_select 0, %s16, %s14
  %18 = sst [smem:[#allocation2]] %s0
  $region1: #{tpu_custom_call.1} parent=0
    #allocation3 [shape = 'u8[4096]{0}', space=vmem, size = 0x1000, scoped, tag = 'input window, operand 1, single buffered']
    #allocation4 [shape = 's32[1]{0}', space=sflag, size = 0x4, scoped, tag = 'scoped memory for tpu_custom_call.1']
    #allocation5 [shape = 's32[1]{0}', space=sflag, size = 0x4, scoped, tag = 'scoped memory for tpu_custom_call.1']
    #allocation6 [shape = 'u8[4096]{0}', space=vmem, size = 0x1000, scoped, tag = 'input window, operand 2, single buffered']
    #allocation7 [shape = 's32[1]{0}', space=sflag, size = 0x4, scoped, tag = 'scoped memory for tpu_custom_call.1']
    #allocation8 [shape = 'u8[512]{0}', space=vmem, size = 0x400, scoped, tag = 'input window, operand 3, single buffered']
    #allocation9 [shape = 'u8[512]{0}', space=vmem, size = 0x400, scoped, tag = 'input window, operand 4, single buffered']
    #allocation10 [shape = 's32[1]{0}', space=sflag, size = 0x4, scoped, tag = 'scoped memory for tpu_custom_call.1']
    #allocation11 [shape = 'u8[8192]{0}', space=vmem, size = 0x2000, scoped, tag = 'input window, operand 5, single buffered']
    #allocation12 [shape = 'u8[512]{0}', space=vmem, size = 0x400, scoped, tag = 'input window, operand 6, single buffered']
    #allocation13 [shape = 's32[1]{0}', space=sflag, size = 0x4, scoped, tag = 'scoped memory for tpu_custom_call.1']
    #allocation14 [shape = 'u8[8192]{0}', space=vmem, size = 0x2000, scoped, tag = 'input window, operand 7, single buffered']
    #allocation15 [shape = 'u8[512]{0}', space=vmem, size = 0x400, scoped, tag = 'input window, operand 8, single buffered']
    #allocation16 [shape = 's32[1]{0}', space=sflag, size = 0x4, scoped, tag = 'scoped memory for tpu_custom_call.1']
    #allocation17 [shape = 'u8[8192]{0}', space=vmem, size = 0x2000, scoped, tag = 'input window, operand 11, single buffered']
    #allocation18 [shape = 'u8[4096]{0}', space=vmem, size = 0x1000, scoped, tag = 'output window, operand 0, single buffered']
    %19 = vsyncpa [#allocation4], 0
    %20 = vsyncpa [#allocation7], 0
    %21 = vsyncpa [#allocation10], 0
    %22 = vsyncpa [#allocation13], 0
    %23 = vsyncpa [#allocation16], 0
    %24 = vsyncpa [#allocation5], 0
    // Predicated region
    $region2: #{tpu_custom_call.1} parent=1 // pred_check
      _
    $region3: #{tpu_custom_call.1} parent=1 // pred_check_branch
      %26 = sbr.rel (0) target = $region5
    $region4: #{tpu_custom_call.1} parent=1 // pred_region
      _
    $region5: #{tpu_custom_call.1} parent=1 // pred_fallthru
      _
    // Predicated region
    $region6: #{tpu_custom_call.1} parent=1 // pred_check
      _
    $region7: #{tpu_custom_call.1} parent=1 // pred_check_branch
      %28 = sbr.rel (0) target = $region9
    $region8: #{tpu_custom_call.1} parent=1 // pred_region
      %s30 = ssub.s32 128, 128
      %31 = vsyncadd [#allocation4], %s30
      %s33 = sshll.u32 [#allocation3], 4
      %s34 = int_to_ptr.vmem [resolvable:$true] %s33
      %36 = dma.hbm_to_vmem [thread:$0]  %s1, 128, %s34, [#allocation4]
    $region9: #{tpu_custom_call.1} parent=1 // pred_fallthru
      _
    // Predicated region
    $region10: #{tpu_custom_call.1} parent=1 // pred_check
      _
    $region11: #{tpu_custom_call.1} parent=1 // pred_check_branch
      %38 = sbr.rel (0) target = $region13
    $region12: #{tpu_custom_call.1} parent=1 // pred_region
      %s40 = ssub.s32 128, 128
      %41 = vsyncadd [#allocation7], %s40
      %s42 = sshll.u32 [#allocation6], 4
      %s43 = int_to_ptr.vmem [resolvable:$true] %s42
      %48 = dma.hbm_to_vmem [thread:$0]  %s2, 128, %s43, [#allocation7], 64, 64, 4
    $region13: #{tpu_custom_call.1} parent=1 // pred_fallthru
      _
    // Predicated region
    $region14: #{tpu_custom_call.1} parent=1 // pred_check
      _
    $region15: #{tpu_custom_call.1} parent=1 // pred_check_branch
      %50 = sbr.rel (0) target = $region17
    $region16: #{tpu_custom_call.1} parent=1 // pred_region
      %s52 = ssub.s32 16, 16
      %53 = vsyncadd [#allocation7], %s52
      %s55 = sshll.u32 [#allocation8], 4
      %s56 = int_to_ptr.vmem [resolvable:$true] %s55
      %58 = dma.hbm_to_vmem [thread:$0]  %s3, 16, %s56, [#allocation7]
    $region17: #{tpu_custom_call.1} parent=1 // pred_fallthru
      _
    // Predicated region
    $region18: #{tpu_custom_call.1} parent=1 // pred_check
      _
    $region19: #{tpu_custom_call.1} parent=1 // pred_check_branch
      %60 = sbr.rel (0) target = $region21
    $region20: #{tpu_custom_call.1} parent=1 // pred_region
      %s62 = ssub.s32 16, 16
      %63 = vsyncadd [#allocation10], %s62
      %s65 = sshll.u32 [#allocation9], 4
      %s66 = int_to_ptr.vmem [resolvable:$true] %s65
      %68 = dma.hbm_to_vmem [thread:$0]  %s4, 16, %s66, [#allocation10]
    $region21: #{tpu_custom_call.1} parent=1 // pred_fallthru
      _
    // Predicated region
    $region22: #{tpu_custom_call.1} parent=1 // pred_check
      _
    $region23: #{tpu_custom_call.1} parent=1 // pred_check_branch
      %70 = sbr.rel (0) target = $region25
    $region24: #{tpu_custom_call.1} parent=1 // pred_region
      %s72 = ssub.s32 256, 256
      %73 = vsyncadd [#allocation10], %s72
      %s74 = sshll.u32 [#allocation11], 4
      %s75 = int_to_ptr.vmem [resolvable:$true] %s74
      %80 = dma.hbm_to_vmem [thread:$0]  %s5, 256, %s75, [#allocation10], 64, 64, 4
    $region25: #{tpu_custom_call.1} parent=1 // pred_fallthru
      _
    // Predicated region
    $region26: #{tpu_custom_call.1} parent=1 // pred_check
      _
    $region27: #{tpu_custom_call.1} parent=1 // pred_check_branch
      %82 = sbr.rel (0) target = $region29
    $region28: #{tpu_custom_call.1} parent=1 // pred_region
      %s84 = ssub.s32 16, 16
      %85 = vsyncadd [#allocation13], %s84
      %s87 = sshll.u32 [#allocation12], 4
      %s88 = int_to_ptr.vmem [resolvable:$true] %s87
      %90 = dma.hbm_to_vmem [thread:$0]  %s6, 16, %s88, [#allocation13]
    $region29: #{tpu_custom_call.1} parent=1 // pred_fallthru
      _
    // Predicated region
    $region30: #{tpu_custom_call.1} parent=1 // pred_check
      _
    $region31: #{tpu_custom_call.1} parent=1 // pred_check_branch
      %92 = sbr.rel (0) target = $region33
    $region32: #{tpu_custom_call.1} parent=1 // pred_region
      %s94 = ssub.s32 256, 256
      %95 = vsyncadd [#allocation13], %s94
      %s96 = sshll.u32 [#allocation14], 4
      %s97 = int_to_ptr.vmem [resolvable:$true] %s96
      %102 = dma.hbm_to_vmem [thread:$0]  %s7, 256, %s97, [#allocation13], 64, 64, 4
    $region33: #{tpu_custom_call.1} parent=1 // pred_fallthru
      _
    // Predicated region
    $region34: #{tpu_custom_call.1} parent=1 // pred_check
      _
    $region35: #{tpu_custom_call.1} parent=1 // pred_check_branch
      %104 = sbr.rel (0) target = $region37
    $region36: #{tpu_custom_call.1} parent=1 // pred_region
      %s106 = ssub.s32 16, 16
      %107 = vsyncadd [#allocation16], %s106
      %s109 = sshll.u32 [#allocation15], 4
      %s110 = int_to_ptr.vmem [resolvable:$true] %s109
      %112 = dma.hbm_to_vmem [thread:$0]  %s8, 16, %s110, [#allocation16]
    $region37: #{tpu_custom_call.1} parent=1 // pred_fallthru
      _
    // Predicated region
    $region38: #{tpu_custom_call.1} parent=1 // pred_check
      _
    $region39: #{tpu_custom_call.1} parent=1 // pred_check_branch
      %114 = sbr.rel (0) target = $region41
    $region40: #{tpu_custom_call.1} parent=1 // pred_region
      _
    $region41: #{tpu_custom_call.1} parent=1 // pred_fallthru
      _
    // Predicated region
    $region42: #{tpu_custom_call.1} parent=1 // pred_check
      _
    $region43: #{tpu_custom_call.1} parent=1 // pred_check_branch
      %116 = sbr.rel (0) target = $region45
    $region44: #{tpu_custom_call.1} parent=1 // pred_region
      _
    $region45: #{tpu_custom_call.1} parent=1 // pred_fallthru
      _
    // Predicated region
    $region46: #{tpu_custom_call.1} parent=1 // pred_check
      _
    $region47: #{tpu_custom_call.1} parent=1 // pred_check_branch
      %118 = sbr.rel (0) target = $region49
    $region48: #{tpu_custom_call.1} parent=1 // pred_region
      %s120 = ssub.s32 256, 256
      %121 = vsyncadd [#allocation16], %s120
      %s122 = sshll.u32 [#allocation17], 4
      %s123 = int_to_ptr.vmem [resolvable:$true] %s122
      %128 = dma.hbm_to_vmem [thread:$0]  %s11, 256, %s123, [#allocation16], 64, 64, 4
    $region49: #{tpu_custom_call.1} parent=1 // pred_fallthru
      _
    // Predicated region
    $region50: #{tpu_custom_call.1} parent=1 // pred_check
      _
    $region51: #{tpu_custom_call.1} parent=1 // pred_check_branch
      %130 = sbr.rel (0) target = $region53
    $region52: #{tpu_custom_call.1} parent=1 // pred_region
      _
    $region53: #{tpu_custom_call.1} parent=1 // pred_fallthru
      _
    // Predicated region
    $region54: #{tpu_custom_call.1} parent=1 // pred_check
      _
    $region55: #{tpu_custom_call.1} parent=1 // pred_check_branch
      %132 = sbr.rel (0) target = $region57
    $region56: #{tpu_custom_call.1} parent=1 // pred_region
      %133 = dma.done [#allocation4], 128
    $region57: #{tpu_custom_call.1} parent=1 // pred_fallthru
      _
    // Predicated region
    $region58: #{tpu_custom_call.1} parent=1 // pred_check
      _
    $region59: #{tpu_custom_call.1} parent=1 // pred_check_branch
      %135 = sbr.rel (0) target = $region61
    $region60: #{tpu_custom_call.1} parent=1 // pred_region
      %136 = dma.done [#allocation7], 128
    $region61: #{tpu_custom_call.1} parent=1 // pred_fallthru
      _
    // Predicated region
    $region62: #{tpu_custom_call.1} parent=1 // pred_check
      _
    $region63: #{tpu_custom_call.1} parent=1 // pred_check_branch
      %138 = sbr.rel (0) target = $region65
    $region64: #{tpu_custom_call.1} parent=1 // pred_region
      %139 = dma.done [#allocation7], 16
    $region65: #{tpu_custom_call.1} parent=1 // pred_fallthru
      _
    // Predicated region
    $region66: #{tpu_custom_call.1} parent=1 // pred_check
      _
    $region67: #{tpu_custom_call.1} parent=1 // pred_check_branch
      %141 = sbr.rel (0) target = $region69
    $region68: #{tpu_custom_call.1} parent=1 // pred_region
      %142 = dma.done [#allocation10], 16
    $region69: #{tpu_custom_call.1} parent=1 // pred_fallthru
      _
    // Predicated region
    $region70: #{tpu_custom_call.1} parent=1 // pred_check
      _
    $region71: #{tpu_custom_call.1} parent=1 // pred_check_branch
      %144 = sbr.rel (0) target = $region73
    $region72: #{tpu_custom_call.1} parent=1 // pred_region
      %145 = dma.done [#allocation10], 256
    $region73: #{tpu_custom_call.1} parent=1 // pred_fallthru
      _
    // Predicated region
    $region74: #{tpu_custom_call.1} parent=1 // pred_check
      _
    $region75: #{tpu_custom_call.1} parent=1 // pred_check_branch
      %147 = sbr.rel (0) target = $region77
    $region76: #{tpu_custom_call.1} parent=1 // pred_region
      %148 = dma.done [#allocation13], 16
    $region77: #{tpu_custom_call.1} parent=1 // pred_fallthru
      _
    // Predicated region
    $region78: #{tpu_custom_call.1} parent=1 // pred_check
      _
    $region79: #{tpu_custom_call.1} parent=1 // pred_check_branch
      %150 = sbr.rel (0) target = $region81
    $region80: #{tpu_custom_call.1} parent=1 // pred_region
      %151 = dma.done [#allocation13], 256
    $region81: #{tpu_custom_call.1} parent=1 // pred_fallthru
      _
    // Predicated region
    $region82: #{tpu_custom_call.1} parent=1 // pred_check
      _
    $region83: #{tpu_custom_call.1} parent=1 // pred_check_branch
      %153 = sbr.rel (0) target = $region85
    $region84: #{tpu_custom_call.1} parent=1 // pred_region
      %154 = dma.done [#allocation16], 16
    $region85: #{tpu_custom_call.1} parent=1 // pred_fallthru
      _
    // Predicated region
    $region86: #{tpu_custom_call.1} parent=1 // pred_check
      _
    $region87: #{tpu_custom_call.1} parent=1 // pred_check_branch
      %156 = sbr.rel (0) target = $region89
    $region88: #{tpu_custom_call.1} parent=1 // pred_region
      %157 = dma.done [#allocation16], 256
    $region89: #{tpu_custom_call.1} parent=1 // pred_fallthru
      _
    %s159 = sld [smem:[#allocation2]]
    %v160 = vld [vmem:[#allocation3] sm:$0xff]
    %v161 = vpack.c.bf16 %v160, %v160
    %v162 = vld [vmem:[#allocation6] sm:$0xf]
    %v163 = vld [vmem:[#allocation6 + $0x4] sm:$0xf]
    %v164 = vld [vmem:[#allocation8] sm:$0x1]
    %v165 = vstv %s159
    %v166 = vmul.f32 %v165, %v164
    %v168 = vlaneseq
    %v169 = vshrl.u32 %v168, 7
    %v170 = vsub.s32 0, %v169
    %v171 = vrot.slane %v166, %v170
    %v175 = vunpack.c.l.b16 %v162
    %v176 = vunpack.c.l.b16 %v163
    %v177 = vpack.c.b16 %v176, %v175
    %vm179 = vcmask 130048
    %v181 = vsel %vm179, %v161, 0
    %183 = vmatprep.subr.bf16.mxu0 0
    %184 = vmatpush1.bf16.msra.mxu0 0
    %185 = vmatprep.subr.bf16.mxu0 0
    %186 = vmatpush1.bf16.msra.mxu0 0
    %187 = vmatprep.subr.bf16.mxu0 0
    %188 = vmatpush1.bf16.msra.mxu0 0
    %189 = vmatprep.subr.bf16.mxu0 0
    %190 = vmatpush1.bf16.msra.mxu0 0
    %191 = vmatprep.subr.bf16.mxu0 0
    %192 = vmatpush1.bf16.msra.mxu0 0
    %193 = vmatprep.subr.bf16.mxu0 0
    %194 = vmatpush1.bf16.msra.mxu0 0
    %195 = vmatprep.subr.bf16.mxu0 0
    %196 = vmatpush1.bf16.msra.mxu0 0
    %197 = vmatprep.subr.bf16.mxu0 0
    %198 = vmatpush1.bf16.msra.mxu0 %v177
    %199 = vmatprep.subr.bf16.mxu0 0
    %200 = vmatpush2.bf16.msra.mxu0 0
    %201 = vmatprep.subr.bf16.mxu0 0
    %202 = vmatpush2.bf16.msra.mxu0 0
    %203 = vmatprep.subr.bf16.mxu0 0
    %204 = vmatpush2.bf16.msra.mxu0 0
    %205 = vmatprep.subr.bf16.mxu0 0
    %206 = vmatpush2.bf16.msra.mxu0 0
    %207 = vmatprep.subr.bf16.mxu0 0
    %208 = vmatpush2.bf16.msra.mxu0 0
    %209 = vmatprep.subr.bf16.mxu0 0
    %210 = vmatpush2.bf16.msra.mxu0 0
    %211 = vmatprep.subr.bf16.mxu0 0
    %212 = vmatpush2.bf16.msra.mxu0 0
    %213 = vmatprep.subr.bf16.mxu0 0
    %214 = vmatpush2.bf16.msra.mxu0 0
    %215 = vmatprep.mubr.bf16.mxu0 0
    %216 = vmatmul.mubr.bf16.gmra.mxu0 %v181
    %v217 = vpop.f32.mrf.mxu0
    %v218 = vadd.f32 %v171, %v217
    %v219 = vpop.f32.mrf.mxu0
    %v220 = vpop.f32.mrf.mxu0
    %v221 = vpop.f32.mrf.mxu0
    %222 = vdwg.mxu0
    %v223 = vld [vmem:[#allocation9] sm:$0x1]
    %v225 = vlaneseq
    %v226 = vshrl.u32 %v225, 7
    %v227 = vsub.s32 0, %v226
    %v228 = vrot.slane %v223, %v227
    %v230 = vadd.f32 %v218, %v228
    %v231 = vmax.f32 %v230, 0.0
    %v232 = vpack.c.bf16 %v231, %v231
    %v233 = vld [vmem:[#allocation11] sm:$0xf]
    %v234 = vld [vmem:[#allocation11 + $0x4] sm:$0xf]
    %v235 = vld [vmem:[#allocation11 + $0x8] sm:$0xf]
    %v236 = vld [vmem:[#allocation11 + $0xc] sm:$0xf]
    %v237 = vld [vmem:[#allocation12] sm:$0x1]
    %v239 = vlaneseq
    %v240 = vshrl.u32 %v239, 7
    %v241 = vsub.s32 0, %v240
    %v242 = vrot.slane %v237, %v241
    %v248 = vunpack.c.l.b16 %v233
    %v249 = vunpack.c.l.b16 %v234
    %v250 = vunpack.c.l.b16 %v235
    %v251 = vunpack.c.l.b16 %v236
    %v252 = vpack.c.b16 %v249, %v248
    %v253 = vpack.c.b16 %v251, %v250
    %vm256 = vcmask 261120
    %v258 = vsel %vm256, %v232, 0
    %260 = vmatprep.subr.bf16.mxu0 0
    %261 = vmatpush1.bf16.msra.mxu0 0
    %262 = vmatprep.subr.bf16.mxu0 0
    %263 = vmatpush1.bf16.msra.mxu0 0
    %264 = vmatprep.subr.bf16.mxu0 0
    %265 = vmatpush1.bf16.msra.mxu0 0
    %266 = vmatprep.subr.bf16.mxu0 0
    %267 = vmatpush1.bf16.msra.mxu0 0
    %268 = vmatprep.subr.bf16.mxu0 0
    %269 = vmatpush1.bf16.msra.mxu0 0
    %270 = vmatprep.subr.bf16.mxu0 0
    %271 = vmatpush1.bf16.msra.mxu0 0
    %272 = vmatprep.subr.bf16.mxu0 0
    %273 = vmatpush1.bf16.msra.mxu0 %v253
    %274 = vmatprep.subr.bf16.mxu0 0
    %275 = vmatpush1.bf16.msra.mxu0 %v252
    %276 = vmatprep.subr.bf16.mxu0 0
    %277 = vmatpush2.bf16.msra.mxu0 0
    %278 = vmatprep.subr.bf16.mxu0 0
    %279 = vmatpush2.bf16.msra.mxu0 0
    %280 = vmatprep.subr.bf16.mxu0 0
    %281 = vmatpush2.bf16.msra.mxu0 0
    %282 = vmatprep.subr.bf16.mxu0 0
    %283 = vmatpush2.bf16.msra.mxu0 0
    %284 = vmatprep.subr.bf16.mxu0 0
    %285 = vmatpush2.bf16.msra.mxu0 0
    %286 = vmatprep.subr.bf16.mxu0 0
    %287 = vmatpush2.bf16.msra.mxu0 0
    %288 = vmatprep.subr.bf16.mxu0 0
    %289 = vmatpush2.bf16.msra.mxu0 0
    %290 = vmatprep.subr.bf16.mxu0 0
    %291 = vmatpush2.bf16.msra.mxu0 0
    %292 = vmatprep.mubr.bf16.mxu0 0
    %293 = vmatmul.mubr.bf16.gmra.mxu0 %v258
    %v294 = vpop.f32.mrf.mxu0
    %v295 = vadd.f32 %v242, %v294
    %v296 = vpop.f32.mrf.mxu0
    %v297 = vpop.f32.mrf.mxu0
    %v298 = vpop.f32.mrf.mxu0
    %299 = vdwg.mxu0
    %v300 = vmax.f32 %v295, 0.0
    %v301 = vpack.c.bf16 %v300, %v300
    %v302 = vld [vmem:[#allocation14] sm:$0xf]
    %v303 = vld [vmem:[#allocation14 + $0x4] sm:$0xf]
    %v304 = vld [vmem:[#allocation14 + $0x8] sm:$0xf]
    %v305 = vld [vmem:[#allocation14 + $0xc] sm:$0xf]
    %v306 = vld [vmem:[#allocation15] sm:$0x1]
    %v308 = vlaneseq
    %v309 = vshrl.u32 %v308, 7
    %v310 = vsub.s32 0, %v309
    %v311 = vrot.slane %v306, %v310
    %v317 = vunpack.c.l.b16 %v302
    %v318 = vunpack.c.l.b16 %v303
    %v319 = vunpack.c.l.b16 %v304
    %v320 = vunpack.c.l.b16 %v305
    %v321 = vpack.c.b16 %v318, %v317
    %v322 = vpack.c.b16 %v320, %v319
    %v326 = vsel %vm256, %v301, 0
    %328 = vmatprep.subr.bf16.mxu0 0
    %329 = vmatpush1.bf16.msra.mxu0 0
    %330 = vmatprep.subr.bf16.mxu0 0
    %331 = vmatpush1.bf16.msra.mxu0 0
    %332 = vmatprep.subr.bf16.mxu0 0
    %333 = vmatpush1.bf16.msra.mxu0 0
    %334 = vmatprep.subr.bf16.mxu0 0
    %335 = vmatpush1.bf16.msra.mxu0 0
    %336 = vmatprep.subr.bf16.mxu0 0
    %337 = vmatpush1.bf16.msra.mxu0 0
    %338 = vmatprep.subr.bf16.mxu0 0
    %339 = vmatpush1.bf16.msra.mxu0 0
    %340 = vmatprep.subr.bf16.mxu0 0
    %341 = vmatpush1.bf16.msra.mxu0 %v322
    %342 = vmatprep.subr.bf16.mxu0 0
    %343 = vmatpush1.bf16.msra.mxu0 %v321
    %344 = vmatprep.subr.bf16.mxu0 0
    %345 = vmatpush2.bf16.msra.mxu0 0
    %346 = vmatprep.subr.bf16.mxu0 0
    %347 = vmatpush2.bf16.msra.mxu0 0
    %348 = vmatprep.subr.bf16.mxu0 0
    %349 = vmatpush2.bf16.msra.mxu0 0
    %350 = vmatprep.subr.bf16.mxu0 0
    %351 = vmatpush2.bf16.msra.mxu0 0
    %352 = vmatprep.subr.bf16.mxu0 0
    %353 = vmatpush2.bf16.msra.mxu0 0
    %354 = vmatprep.subr.bf16.mxu0 0
    %355 = vmatpush2.bf16.msra.mxu0 0
    %356 = vmatprep.subr.bf16.mxu0 0
    %357 = vmatpush2.bf16.msra.mxu0 0
    %358 = vmatprep.subr.bf16.mxu0 0
    %359 = vmatpush2.bf16.msra.mxu0 0
    %360 = vmatprep.mubr.bf16.mxu0 0
    %361 = vmatmul.mubr.bf16.gmra.mxu0 %v326
    %v362 = vpop.f32.mrf.mxu0
    %v363 = vadd.f32 %v311, %v362
    %v364 = vpop.f32.mrf.mxu0
    %v365 = vpop.f32.mrf.mxu0
    %v366 = vpop.f32.mrf.mxu0
    %367 = vdwg.mxu0
    %v368 = vmax.f32 %v363, 0.0
    %v369 = vpack.c.bf16 %v368, %v368
    %v370 = vld [vmem:[%s9] sm:$0xf]
    %v371 = vld [vmem:[%s9 + $0x4] sm:$0xf]
    %v372 = vld [vmem:[%s9 + $0x8] sm:$0xf]
    %v373 = vld [vmem:[%s9 + $0xc] sm:$0xf]
    %v374 = vld [vmem:[%s10] sm:$0x1]
    %v376 = vlaneseq
    %v377 = vshrl.u32 %v376, 7
    %v378 = vsub.s32 0, %v377
    %v379 = vrot.slane %v374, %v378
    %v385 = vunpack.c.l.b16 %v370
    %v386 = vunpack.c.l.b16 %v371
    %v387 = vunpack.c.l.b16 %v372
    %v388 = vunpack.c.l.b16 %v373
    %v389 = vpack.c.b16 %v386, %v385
    %v390 = vpack.c.b16 %v388, %v387
    %v394 = vsel %vm256, %v369, 0
    %396 = vmatprep.subr.bf16.mxu0 0
    %397 = vmatpush1.bf16.msra.mxu0 0
    %398 = vmatprep.subr.bf16.mxu0 0
    %399 = vmatpush1.bf16.msra.mxu0 0
    %400 = vmatprep.subr.bf16.mxu0 0
    %401 = vmatpush1.bf16.msra.mxu0 0
    %402 = vmatprep.subr.bf16.mxu0 0
    %403 = vmatpush1.bf16.msra.mxu0 0
    %404 = vmatprep.subr.bf16.mxu0 0
    %405 = vmatpush1.bf16.msra.mxu0 0
    %406 = vmatprep.subr.bf16.mxu0 0
    %407 = vmatpush1.bf16.msra.mxu0 0
    %408 = vmatprep.subr.bf16.mxu0 0
    %409 = vmatpush1.bf16.msra.mxu0 %v390
    %410 = vmatprep.subr.bf16.mxu0 0
    %411 = vmatpush1.bf16.msra.mxu0 %v389
    %412 = vmatprep.subr.bf16.mxu0 0
    %413 = vmatpush2.bf16.msra.mxu0 0
    %414 = vmatprep.subr.bf16.mxu0 0
    %415 = vmatpush2.bf16.msra.mxu0 0
    %416 = vmatprep.subr.bf16.mxu0 0
    %417 = vmatpush2.bf16.msra.mxu0 0
    %418 = vmatprep.subr.bf16.mxu0 0
    %419 = vmatpush2.bf16.msra.mxu0 0
    %420 = vmatprep.subr.bf16.mxu0 0
    %421 = vmatpush2.bf16.msra.mxu0 0
    %422 = vmatprep.subr.bf16.mxu0 0
    %423 = vmatpush2.bf16.msra.mxu0 0
    %424 = vmatprep.subr.bf16.mxu0 0
    %425 = vmatpush2.bf16.msra.mxu0 0
    %426 = vmatprep.subr.bf16.mxu0 0
    %427 = vmatpush2.bf16.msra.mxu0 0
    %428 = vmatprep.mubr.bf16.mxu0 0
    %429 = vmatmul.mubr.bf16.gmra.mxu0 %v394
    %v430 = vpop.f32.mrf.mxu0
    %v431 = vadd.f32 %v379, %v430
    %v432 = vpop.f32.mrf.mxu0
    %v433 = vpop.f32.mrf.mxu0
    %v434 = vpop.f32.mrf.mxu0
    %435 = vdwg.mxu0
    %v436 = vmax.f32 %v431, 0.0
    %v437 = vpack.c.bf16 %v436, %v436
    %v438 = vld [vmem:[#allocation17] sm:$0xf]
    %v439 = vld [vmem:[#allocation17 + $0x4] sm:$0xf]
    %v440 = vld [vmem:[#allocation17 + $0x8] sm:$0xf]
    %v441 = vld [vmem:[#allocation17 + $0xc] sm:$0xf]
    %v442 = vld [vmem:[%s12] sm:$0x1]
    %v444 = vlaneseq
    %v445 = vshrl.u32 %v444, 7
    %v446 = vsub.s32 0, %v445
    %v447 = vrot.slane %v442, %v446
    %v453 = vunpack.c.l.b16 %v438
    %v454 = vunpack.c.l.b16 %v439
    %v455 = vunpack.c.l.b16 %v440
    %v456 = vunpack.c.l.b16 %v441
    %v457 = vpack.c.b16 %v454, %v453
    %v458 = vpack.c.b16 %v456, %v455
    %v462 = vsel %vm256, %v437, 0
    %464 = vmatprep.subr.bf16.mxu0 0
    %465 = vmatpush1.bf16.msra.mxu0 0
    %466 = vmatprep.subr.bf16.mxu0 0
    %467 = vmatpush1.bf16.msra.mxu0 0
    %468 = vmatprep.subr.bf16.mxu0 0
    %469 = vmatpush1.bf16.msra.mxu0 0
    %470 = vmatprep.subr.bf16.mxu0 0
    %471 = vmatpush1.bf16.msra.mxu0 0
    %472 = vmatprep.subr.bf16.mxu0 0
    %473 = vmatpush1.bf16.msra.mxu0 0
    %474 = vmatprep.subr.bf16.mxu0 0
    %475 = vmatpush1.bf16.msra.mxu0 0
    %476 = vmatprep.subr.bf16.mxu0 0
    %477 = vmatpush1.bf16.msra.mxu0 %v458
    %478 = vmatprep.subr.bf16.mxu0 0
    %479 = vmatpush1.bf16.msra.mxu0 %v457
    %480 = vmatprep.subr.bf16.mxu0 0
    %481 = vmatpush2.bf16.msra.mxu0 0
    %482 = vmatprep.subr.bf16.mxu0 0
    %483 = vmatpush2.bf16.msra.mxu0 0
    %484 = vmatprep.subr.bf16.mxu0 0
    %485 = vmatpush2.bf16.msra.mxu0 0
    %486 = vmatprep.subr.bf16.mxu0 0
    %487 = vmatpush2.bf16.msra.mxu0 0
    %488 = vmatprep.subr.bf16.mxu0 0
    %489 = vmatpush2.bf16.msra.mxu0 0
    %490 = vmatprep.subr.bf16.mxu0 0
    %491 = vmatpush2.bf16.msra.mxu0 0
    %492 = vmatprep.subr.bf16.mxu0 0
    %493 = vmatpush2.bf16.msra.mxu0 0
    %494 = vmatprep.subr.bf16.mxu0 0
    %495 = vmatpush2.bf16.msra.mxu0 0
    %496 = vmatprep.mubr.bf16.mxu0 0
    %497 = vmatmul.mubr.bf16.gmra.mxu0 %v462
    %v498 = vpop.f32.mrf.mxu0
    %v499 = vadd.f32 %v447, %v498
    %v500 = vpop.f32.mrf.mxu0
    %v501 = vpop.f32.mrf.mxu0
    %v502 = vpop.f32.mrf.mxu0
    %503 = vdwg.mxu0
    %504 = vst.msk [vmem:[#allocation18] sm:$0xff] %vm256, %v499
    // Predicated region
    $region90: #{tpu_custom_call.1} parent=1 // pred_check
      _
    $region91: #{tpu_custom_call.1} parent=1 // pred_check_branch
      %506 = sbr.rel (0) target = $region93
    $region92: #{tpu_custom_call.1} parent=1 // pred_region
      %s508 = ssub.s32 128, 128
      %509 = vsyncadd [#allocation5], %s508
      %s511 = sshll.u32 [#allocation18], 4
      %s512 = int_to_ptr.vmem [resolvable:$true] %s511
      %514 = dma.vmem_to_hbm [thread:$0]  %s512, 128, %s13, [#allocation5]
    $region93: #{tpu_custom_call.1} parent=1 // pred_fallthru
      _
    // Predicated region
    $region94: #{tpu_custom_call.1} parent=1 // pred_check
      _
    $region95: #{tpu_custom_call.1} parent=1 // pred_check_branch
      %516 = sbr.rel (0) target = $region97
    $region96: #{tpu_custom_call.1} parent=1 // pred_region
      %517 = dma.done [#allocation5], 128
    $region97: #{tpu_custom_call.1} parent=1 // pred_fallthru
      _
    %518 = vsyncpa [#allocation4], 1
    %519 = vsyncpa [#allocation7], 1
    %520 = vsyncpa [#allocation10], 1
    %521 = vsyncpa [#allocation13], 1
    %522 = vsyncpa [#allocation16], 1
    %523 = vsyncpa [#allocation5], 1

</llo_original>
